<compile_context>
chip_gen: v7x
topology: tpu7x:2x2x1
jax: 0.10.0
libtpu: 0.0.40
codegen_flags: <defaults>
</compile_context>

<pallas_src>
import functools
import math

import jax
import jax.numpy as jnp
from jax.experimental import pallas as pl
from jax.experimental.pallas import tpu as pltpu


def _focal_kernel(*args, gamma, has_alpha, ragged, rem, n_outer, n_inner,
                  bf16_exp):
    if has_alpha:
        pred_ref, lab_ref, alpha_ref, out_ref = args
    else:
        pred_ref, lab_ref, out_ref = args
        alpha_ref = None

    @pl.when(pl.program_id(2) == 0)
    def _():
        out_ref[...] = jnp.zeros_like(out_ref)

    x = pred_ref[...].astype(jnp.float32)            # (1, C, tS) cast post-DMA
    lab = lab_ref[...]                               # (1, 1, tS) int32

    # log-softmax over the channel (sublane) axis.
    m = jnp.max(x, axis=1, keepdims=True)            # (1, 1, tS)
    xm = x - m
    if bf16_exp:
        # ~2x EUP throughput on v6e/v7x; z accumulation / log stay in f32.
        e = jnp.exp(xm.astype(jnp.bfloat16)).astype(jnp.float32)
    else:
        e = jnp.exp(xm)                              # (1, C, tS)  EUP
    z = jnp.sum(e, axis=1, keepdims=True)            # (1, 1, tS)

    # Gather the target channel with select-reduce (no float one-hot muls).
    cls = jax.lax.broadcasted_iota(jnp.int32, x.shape, 1)
    sel = cls == lab                                 # (1, C, tS) bool
    xm_t = jnp.sum(jnp.where(sel, xm, 0.0), axis=1, keepdims=True)  # x_t - m
    e_t = jnp.sum(jnp.where(sel, e, 0.0), axis=1, keepdims=True)    # exp(x_t - m)

    logpt = xm_t - jnp.log(z)                        # log p_t
    pt = e_t / z                                     # p_t (reuses e, no 2nd exp)

    if has_alpha:
        a = alpha_ref[...].astype(jnp.float32)       # (1, C, 1)
        at = jnp.sum(jnp.where(sel, a, 0.0), axis=1, keepdims=True)
        logpt = logpt * at                           # alpha after pt (per spec)

    om = 1.0 - pt
    if gamma == 2.0:
        focal = om * om
    elif gamma == 1.0:
        focal = om
    elif gamma == 0.0:
        focal = jnp.ones_like(om)
    else:
        # fp rounding could leave pt marginally above 1 -> clamp before pow.
        focal = jnp.maximum(om, 0.0) ** gamma
    loss = -focal * logpt                            # (1, 1, tS)

    if ragged:
        # Only the very last spatial tile contains out-of-bounds (garbage)
        # lanes; mask them there and keep all other tiles select-free.
        is_last = jnp.logical_and(pl.program_id(1) == n_outer - 1,
                                  pl.program_id(2) == n_inner - 1)

        @pl.when(is_last)
        def _():
            lane = jax.lax.broadcasted_iota(jnp.int32, loss.shape, 2)
            masked = jnp.where(lane < rem, loss, 0.0)
            out_ref[...] += jnp.sum(masked, axis=2,
                                    keepdims=True).reshape(out_ref.shape)

        @pl.when(jnp.logical_not(is_last))
        def _():
            out_ref[...] += jnp.sum(loss, axis=2,
                                    keepdims=True).reshape(out_ref.shape)
    else:
        out_ref[...] += jnp.sum(loss, axis=2,
                                keepdims=True).reshape(out_ref.shape)


def _pick_spatial_tile(S, C, itemsize):
    """Lane tile (multiple of 128) sized by bytes, not a fixed constant."""
    s_cap = ((S + 127) // 128) * 128
    # ~2 MiB of logits per HBM tile amortizes the ~0.35 us/step grid overhead
    # on all of v5e/v6e/v7x ...
    t = (2 * 1024 * 1024) // max(1, C * itemsize)
    # ... while the per-step VMEM footprint (double-buffered logits + labels
    # DMA plus ~3 f32-sized working copies of the (C, tS) tile) stays under
    # ~12 MiB -> fits v5e's 16 MiB default scoped VMEM (v6e/v7x have >=32 MiB
    # scoped; v7x has only 64 MiB physical, so we never chase bigger tiles).
    per_lane = 2 * (C * itemsize + 4) + 3 * 4 * C
    t = min(t, (12 * 1024 * 1024) // per_lane)
    t = max(128, (t // 128) * 128)
    return min(t, s_cap)


def focal_loss(logits, target, gamma=2, alpha=None, size_average=True,
               max_lanes_per_tile=None, bf16_exp=False):
    """FocalLoss.forward.

    logits: (B, C, *spatial) or (N, C) float logits (any float dtype).
    target: matching integer label map: (B, *spatial) / (B, 1, *spatial) / (N,).
    bf16_exp: run the bulk softmax exp in bf16 (v6e/v7x only; ~2x EUP).
    """
    if logits.ndim > 2:
        B, C = int(logits.shape[0]), int(logits.shape[1])
        S = int(math.prod(logits.shape[2:]))
        pred = logits.reshape(B, C, S)          # channel-major, no transpose
        if target.ndim == logits.ndim and target.shape[1] == 1:
            target = target.reshape(B, S)
        lab = target.reshape(B, S)
    else:
        # TODO(synk): the 2-D (N, C) path still pays a wrapper-side HBM
        # transpose to reach channel-major layout; a (tN, C) lane-axis-softmax
        # kernel variant would keep the logits read single-pass.
        N, C = int(logits.shape[0]), int(logits.shape[1])
        B, S = 1, N
        pred = logits.T.reshape(1, C, N)
        lab = target.reshape(1, N)

    # Normalize alpha exactly like the PyTorch constructor.
    if alpha is None:
        alpha_vec = None
    elif isinstance(alpha, (float, int)):
        if C != 2:
            raise ValueError("scalar alpha implies binary (C==2) problem")
        alpha_vec = jnp.asarray([float(alpha), 1.0 - float(alpha)], jnp.float32)
    else:
        alpha_vec = jnp.asarray([float(a) for a in alpha], jnp.float32)
        if alpha_vec.shape[0] != C:
            raise ValueError("len(alpha) must equal number of classes")

    itemsize = jnp.dtype(pred.dtype).itemsize
    tS = _pick_spatial_tile(S, C, itemsize)
    if max_lanes_per_tile is not None:
        tS = min(tS, max(128, (int(max_lanes_per_tile) // 128) * 128))

    n_tiles = -(-S // tS)
    # Extra "parallel" grid axis over the spatial reduction when B == 1 so
    # both v7x TensorCores get work (exact factorization only, so no block is
    # ever fully out of bounds).
    n_outer = 2 if (B == 1 and n_tiles % 2 == 0) else 1
    n_inner = n_tiles // n_outer

    ragged = (S % tS) != 0          # no jnp.pad of logits: ragged edge block
    rem = S - (n_tiles - 1) * tS    # valid lanes in the last spatial tile

    lab = lab.reshape(B, 1, S).astype(jnp.int32)
    # TODO(synk): labels could ship as int8 (C <= 127) to shave another ~25%
    # of HBM traffic at tiny C in f32.

    has_alpha = alpha_vec is not None
    kernel = functools.partial(
        _focal_kernel, gamma=float(gamma), has_alpha=has_alpha, ragged=ragged,
        rem=rem, n_outer=n_outer, n_inner=n_inner, bf16_exp=bf16_exp)

    # NOTE: for C < 8 the channel-on-sublane layout leaves (8-C)/8 of every
    # vreg idle; folding spatial positions into the unused sublanes would cut
    # VPU/EUP work further, but only matters once the kernel is compute-bound
    # rather than HBM/overhead-bound.
    in_specs = [
        pl.BlockSpec((1, C, tS), lambda b, o, i: (b, 0, o * n_inner + i)),
        pl.BlockSpec((1, 1, tS), lambda b, o, i: (b, 0, o * n_inner + i)),
    ]
    inputs = [pred, lab]
    if has_alpha:
        in_specs.append(pl.BlockSpec((1, C, 1), lambda b, o, i: (0, 0, 0)))
        inputs.append(alpha_vec.reshape(1, C, 1))

    cost = pl.CostEstimate(
        flops=12 * B * C * S,
        transcendentals=(C + 1) * B * S,
        bytes_accessed=B * C * S * itemsize + B * S * 4 + B * n_outer * 4,
    )

    partials = pl.pallas_call(
        kernel,
        out_shape=jax.ShapeDtypeStruct((B, n_outer, 1, 1), jnp.float32),
        grid_spec=pltpu.PrefetchScalarGridSpec(
            num_scalar_prefetch=0,
            grid=(B, n_outer, n_inner),
            in_specs=in_specs,
            out_specs=pl.BlockSpec((1, 1, 1, 1),
                                   lambda b, o, i: (b, o, 0, 0)),
        ),
        compiler_params=pltpu.CompilerParams(
            dimension_semantics=("parallel", "parallel", "arbitrary")),
        cost_estimate=cost,
    )(*inputs)

    total = jnp.sum(partials)
    if size_average:
        return total / float(B * S)
    return total


if __name__ == "__main__":
    key = jax.random.PRNGKey(0)
    k1, k2 = jax.random.split(key)

    B, C, H, W = 2, 4, 16, 16
    y_pred = jax.random.normal(k1, (B, C, H, W), dtype=jnp.float32)
    y_true = jax.random.randint(k2, (B, H, W), 0, C)

    # Default module config: gamma=2, alpha=None, size_average=True.
    loss = focal_loss(y_pred, y_true, gamma=2, alpha=None, size_average=True)
    jax.block_until_ready(loss)

    # Pure-JAX reference (mirrors the PyTorch forward exactly).
    logp = jax.nn.log_softmax(y_pred, axis=1)
    lp_t = jnp.take_along_axis(
        logp, y_true[:, None, :, :].astype(jnp.int32), axis=1)[:, 0]
    pt = jnp.exp(lp_t)
    ref = jnp.mean(-((1.0 - pt) ** 2) * lp_t)
    assert jnp.allclose(loss, ref, atol=1e-5, rtol=1e-5), (loss, ref)

    # alpha (per-class weights) + size_average=False path.
    alpha = [0.25, 0.75, 0.5, 0.5]
    loss_a = focal_loss(y_pred, y_true, gamma=2, alpha=alpha,
                        size_average=False)
    jax.block_until_ready(loss_a)
    at = jnp.asarray(alpha, jnp.float32)[y_true]
    ref_a = jnp.sum(-((1.0 - pt) ** 2) * (lp_t * at))
    assert jnp.allclose(loss_a, ref_a, atol=1e-4, rtol=1e-5), (loss_a, ref_a)

    # Non-128-divisible spatial extent: exercises the ragged last tile (the
    # logits are no longer padded in the wrapper) and a non-integer gamma.
    k3, k4 = jax.random.split(k2)
    Hb, Wb = 15, 15                       # S = 225
    y_pred_b = jax.random.normal(k3, (1, C, Hb, Wb), dtype=jnp.float32)
    y_true_b = jax.random.randint(k4, (1, Hb, Wb), 0, C)
    loss_b = focal_loss(y_pred_b, y_true_b, gamma=2.5)
    jax.block_until_ready(loss_b)
    logp_b = jax.nn.log_softmax(y_pred_b, axis=1)
    lp_b = jnp.take_along_axis(
        logp_b, y_true_b[:, None].astype(jnp.int32), axis=1)[:, 0]
    pt_b = jnp.exp(lp_b)
    ref_b = jnp.mean(-((1.0 - pt_b) ** 2.5) * lp_b)
    assert jnp.allclose(loss_b, ref_b, atol=1e-5, rtol=1e-5), (loss_b, ref_b)

    # Force multiple spatial tiles at small shapes:
    #  * B == 1 -> 2-way "parallel" outer split (v7x megacore path) + ragged.
    loss_c = focal_loss(y_pred_b, y_true_b, gamma=2.5, max_lanes_per_tile=128)
    jax.block_until_ready(loss_c)
    assert jnp.allclose(loss_c, ref_b, atol=1e-5, rtol=1e-5), (loss_c, ref_b)
    #  * B == 2 -> accumulation over the inner "arbitrary" reduction axis.
    loss_d = focal_loss(y_pred, y_true, gamma=2, max_lanes_per_tile=128)
    jax.block_until_ready(loss_d)
    assert jnp.allclose(loss_d, ref, atol=1e-5, rtol=1e-5), (loss_d, ref)

    print("KERNEL_OK")
</pallas_src>

<mosaic_0001>
module attributes {stable_mosaic.version = 11 : i64} {
  func.func @_focal_kernel(%arg0: i32, %arg1: i32, %arg2: i32, %arg3: memref<1x4x256xf32, #tpu.memory_space<vmem>>, %arg4: memref<1x1x256xi32, #tpu.memory_space<vmem>>, %arg5: memref<1x1x1x1xf32, #tpu.memory_space<vmem>>) attributes {dimension_semantics = [#tpu.dimension_semantics<parallel>, #tpu.dimension_semantics<parallel>, #tpu.dimension_semantics<arbitrary>], iteration_bounds = array<i64: 2, 1, 1>, scalar_prefetch = 0 : i64, scratch_operands = 0 : i64, tpu.core_type = #tpu.core_type<tc>, window_params = [{transform_indices = @transform_0, window_bounds = array<i64: 1, 4, 256>}, {transform_indices = @transform_1, window_bounds = array<i64: 1, 1, 256>}, {transform_indices = @transform_2, window_bounds = array<i64: 1, 1, 1, 1>}]} {
    %c0_i32 = arith.constant 0 : i32
    %0 = arith.cmpi eq, %arg2, %c0_i32 : i32
    %1 = arith.extui %0 : i1 to i32
    %c0_i32_0 = arith.constant 0 : i32
    %2 = arith.cmpi ne, %1, %c0_i32_0 : i32
    scf.if %2 {
      %cst_22 = arith.constant 0.000000e+00 : f32
      %38 = vector.broadcast %cst_22 : f32 to vector<1x1x1x1xf32>
      %c0_23 = arith.constant 0 : index
      %c0_24 = arith.constant 0 : index
      %c0_25 = arith.constant 0 : index
      %c0_26 = arith.constant 0 : index
      %39 = vector.load %arg5[%c0_23, %c0_24, %c0_25, %c0_26] : memref<1x1x1x1xf32, #tpu.memory_space<vmem>>, vector<1x1x1x1xf32>
      tpu.vector_store %arg5[%c0_23, %c0_24, %c0_25, %c0_26], %38 {strides = array<i32>} : memref<1x1x1x1xf32, #tpu.memory_space<vmem>>, vector<1x1x1x1xf32>,
    } else {
    }
    %c0 = arith.constant 0 : index
    %c0_1 = arith.constant 0 : index
    %c0_2 = arith.constant 0 : index
    %3 = vector.load %arg3[%c0, %c0_1, %c0_2] : memref<1x4x256xf32, #tpu.memory_space<vmem>>, vector<1x4x256xf32>
    %c0_3 = arith.constant 0 : index
    %c0_4 = arith.constant 0 : index
    %c0_5 = arith.constant 0 : index
    %4 = vector.load %arg4[%c0_3, %c0_4, %c0_5] : memref<1x1x256xi32, #tpu.memory_space<vmem>>, vector<1x1x256xi32>
    %cst = arith.constant dense<0xFF800000> : vector<1x256xf32>
    %5 = vector.multi_reduction <maximumf>, %3, %cst [1] : vector<1x4x256xf32> to vector<1x256xf32>
    %6 = vector.shape_cast %5 : vector<1x256xf32> to vector<1x1x256xf32>
    %7 = vector.broadcast %6 : vector<1x1x256xf32> to vector<1x4x256xf32>
    %8 = arith.subf %3, %7 : vector<1x4x256xf32>
    %9 = math.exp %8 : vector<1x4x256xf32>
    %cst_6 = arith.constant dense<0.000000e+00> : vector<1x256xf32>
    %10 = vector.multi_reduction <add>, %9, %cst_6 [1] : vector<1x4x256xf32> to vector<1x256xf32>
    %11 = vector.shape_cast %10 : vector<1x256xf32> to vector<1x1x256xf32>
    %12 = tpu.iota {dimensions = array<i32: 1>} : vector<1x4x256xi32>
    %13 = vector.broadcast %4 : vector<1x1x256xi32> to vector<1x4x256xi32>
    %14 = arith.cmpi eq, %12, %13 : vector<1x4x256xi32>
    %cst_7 = arith.constant 0.000000e+00 : f32
    %15 = vector.broadcast %cst_7 : f32 to vector<1x4x256xf32>
    %16 = arith.select %14, %8, %15 : vector<1x4x256xi1>, vector<1x4x256xf32>
    %cst_8 = arith.constant dense<0.000000e+00> : vector<1x256xf32>
    %17 = vector.multi_reduction <add>, %16, %cst_8 [1] : vector<1x4x256xf32> to vector<1x256xf32>
    %18 = vector.shape_cast %17 : vector<1x256xf32> to vector<1x1x256xf32>
    %cst_9 = arith.constant 0.000000e+00 : f32
    %19 = vector.broadcast %cst_9 : f32 to vector<1x4x256xf32>
    %20 = arith.select %14, %9, %19 : vector<1x4x256xi1>, vector<1x4x256xf32>
    %cst_10 = arith.constant dense<0.000000e+00> : vector<1x256xf32>
    %21 = vector.multi_reduction <add>, %20, %cst_10 [1] : vector<1x4x256xf32> to vector<1x256xf32>
    %22 = vector.shape_cast %21 : vector<1x256xf32> to vector<1x1x256xf32>
    %23 = math.log %11 : vector<1x1x256xf32>
    %24 = arith.subf %18, %23 : vector<1x1x256xf32>
    %25 = arith.divf %22, %11 : vector<1x1x256xf32>
    %cst_11 = arith.constant 1.000000e+00 : f32
    %26 = vector.broadcast %cst_11 : f32 to vector<1x1x256xf32>
    %27 = arith.subf %26, %25 : vector<1x1x256xf32>
    %28 = arith.mulf %27, %27 : vector<1x1x256xf32>
    %cst_12 = arith.constant 0.000000e+00 : f32
    %29 = vector.broadcast %cst_12 : f32 to vector<1x1x256xf32>
    %30 = arith.subf %29, %28 : vector<1x1x256xf32>
    %31 = arith.mulf %30, %24 : vector<1x1x256xf32>
    %c0_13 = arith.constant 0 : index
    %c0_14 = arith.constant 0 : index
    %c0_15 = arith.constant 0 : index
    %c0_16 = arith.constant 0 : index
    %32 = vector.load %arg5[%c0_13, %c0_14, %c0_15, %c0_16] : memref<1x1x1x1xf32, #tpu.memory_space<vmem>>, vector<1x1x1x1xf32>
    %cst_17 = arith.constant dense<0.000000e+00> : vector<1x1xf32>
    %33 = vector.multi_reduction <add>, %31, %cst_17 [2] : vector<1x1x256xf32> to vector<1x1xf32>
    %34 = vector.shape_cast %33 : vector<1x1xf32> to vector<1x1x1xf32>
    %35 = vector.shape_cast %34 : vector<1x1x1xf32> to vector<1x1x1x1xf32>
    %36 = arith.addf %32, %35 : vector<1x1x1x1xf32>
    %c0_18 = arith.constant 0 : index
    %c0_19 = arith.constant 0 : index
    %c0_20 = arith.constant 0 : index
    %c0_21 = arith.constant 0 : index
    %37 = vector.load %arg5[%c0_18, %c0_19, %c0_20, %c0_21] : memref<1x1x1x1xf32, #tpu.memory_space<vmem>>, vector<1x1x1x1xf32>
    tpu.vector_store %arg5[%c0_18, %c0_19, %c0_20, %c0_21], %36 {strides = array<i32>} : memref<1x1x1x1xf32, #tpu.memory_space<vmem>>, vector<1x1x1x1xf32>,
    return
  }
  func.func @transform_0(%arg0: i32, %arg1: i32, %arg2: i32) -> (i32, i32, i32) {
    %c1_i32 = arith.constant 1 : i32
    %0 = arith.muli %arg1, %c1_i32 : i32
    %1 = arith.addi %0, %arg2 : i32
    %c0_i32 = arith.constant 0 : i32
    %c0_i32_0 = arith.constant 0 : i32
    return %arg0, %c0_i32, %1 : i32, i32, i32
  }
  func.func @transform_1(%arg0: i32, %arg1: i32, %arg2: i32) -> (i32, i32, i32) {
    %c1_i32 = arith.constant 1 : i32
    %0 = arith.muli %arg1, %c1_i32 : i32
    %1 = arith.addi %0, %arg2 : i32
    %c0_i32 = arith.constant 0 : i32
    %c0_i32_0 = arith.constant 0 : i32
    return %arg0, %c0_i32, %1 : i32, i32, i32
  }
  func.func @transform_2(%arg0: i32, %arg1: i32, %arg2: i32) -> (i32, i32, i32, i32) {
    %c0_i32 = arith.constant 0 : i32
    %c0_i32_0 = arith.constant 0 : i32
    %c0_i32_1 = arith.constant 0 : i32
    return %arg0, %arg1, %c0_i32, %c0_i32_0 : i32, i32, i32, i32
  }
}

</mosaic_0001>

<llo_original>
// kernel: tpu_custom_call.1
$region0: #{tpu_custom_call.1}
  #allocation0 [shape = 'u32[]', space=smem, size = 0x4, offset = 0x4, fixed_abs, tag = 'smem constant byte address 0x4 - core index']
  #allocation1 [shape = 'u32[144,128]{1,0:T(1,128)}', space=vmem, size = 0x12000, scoped, tag = 'internal scratch']
  %s0 = inlined_call_operand.hbm [shape: f32[2,4,256], index: 0, kind: input, shape index: {}]
  %s1 = inlined_call_operand.hbm [shape: s32[2,1,256], index: 1, kind: input, shape index: {}]
  %s2 = inlined_call_operand.vmem [shape: f32[2,1,1,1], index: 2, kind: output, shape index: {}]
  %s3 = sld [smem:[#allocation0]]
  $region53: #{tpu_custom_call.1} parent=0
    _
  %s5 = ssub.s32 1, %s3
  %s6 = scalar_select 0, %s5, %s3
  $region1: #{tpu_custom_call.1} parent=0
    #allocation2 [shape = 'u8[8192]{0}', space=vmem, size = 0x2000, scoped, tag = 'input window, operand 0']
    #allocation3 [shape = 's32[2]{0}', space=sflag, size = 0x8, scoped, tag = 'scoped memory for tpu_custom_call.1']
    #allocation4 [shape = 'u8[2048]{0}', space=vmem, size = 0x800, scoped, tag = 'input window, operand 1']
    #allocation5 [shape = 's32[2]{0}', space=sflag, size = 0x8, scoped, tag = 'scoped memory for tpu_custom_call.1']
    %7 = vsyncpa [#allocation3], 0
    %s8 = scalar_lea.sflag [#allocation3], 1
    %9 = vsyncpa %s8, 0
    %10 = vsyncpa [#allocation5], 0
    %s11 = scalar_lea.sflag [#allocation5], 1
    %12 = vsyncpa %s11, 0
    loop: start=0, step=1, limit=4
    $region2: #{tpu_custom_call.1} parent=1 // loop_pre_header
      _
    $region3: #{tpu_custom_call.1} parent=1 // loop_header
      %s14 = sphi 0, %s18
      %p15 = scmp.ge.s32.totalorder %s14, 4
      %s21 = sphi 0, %s40
      %s22 = sphi 0, %s36
      %s23 = sphi 0, %s32
      %s24 = sphi 0, %s21
      %s25 = sphi 0, %s22
      %s26 = sphi 0, %s23
      %s27 = sphi 0, %s24
      %s28 = sphi 0, %s25
      %s29 = sphi 0, %s26
      %s47 = sphi 0, %s49
      %s50 = sphi 0, %s47
      %s51 = sphi 0, %s50
      %s67 = sphi 0, %s51
      %s77 = sphi 0, %s79
      %s80 = sphi 0, %s77
      %s81 = sphi 0, %s80
      %s97 = sphi 0, %s81
      %s105 = sphi 0, %s107
      %s108 = sphi 0, %s105
      %s109 = sphi 0, %s108
      %s125 = sphi 0, %s109
    $region4: #{tpu_custom_call.1} parent=1 // loop_header_branch
      %17 = sbr.rel (%p15) target = $region8
    $region5: #{tpu_custom_call.1} parent=1 // loop_body
      %s19 = ssub.s32 %s14, 1
      %s20 = ssub.s32 %s14, 2
      %s30 = sadd.s32 1, %s23
      %p31 = scmp.ge.s32.totalorder %s30, 1
      %s32 = scalar_select %p31, 0, %s30
      %s33 = sadd.s32 1, %s22
      %s34 = scalar_select %p31, %s33, %s22
      %p35 = scmp.ge.s32.totalorder %s34, 1
      %s36 = scalar_select %p35, 0, %s34
      %s37 = sadd.s32 1, %s21
      %s38 = scalar_select %p35, %s37, %s21
      %p39 = scmp.ge.s32.totalorder %s38, 2
      %s40 = scalar_select %p39, 0, %s38
      %s41 = sadd.s32 %s22, %s23
      %s42 = sadd.s32 %s36, %s32
      %s43 = ssub.s32 %s21, %s40
      %s44 = ssub.s32 %s41, %s42
      %s45 = sor.u32 %s43, %s44
      %p46 = scmp.eq.s32.totalorder %s45, 0
      %s48 = sadd.s32 %s47, 1
      %s49 = scalar_select %p46, %s47, %s48
      %p52 = pneg %p46
      %p53 = scmp.eq.s32.totalorder %s14, 1
      %p54 = por %p52, %p53
      %p55 = scmp.ne.s32.totalorder %s47, %s50
      %p56 = scmp.eq.s32.totalorder %s14, 0
      %p57 = por %p55, %p56
      %p58 = scmp.ne.s32.totalorder %s47, %s50
      %p59 = scmp.eq.s32.totalorder %s19, 1
      %p60 = por %p58, %p59
      %p61 = scmp.ne.s32.totalorder %s50, %s51
      %p62 = scmp.eq.s32.totalorder %s19, 0
      %p63 = por %p61, %p62
      %p64 = scmp.ne.s32.totalorder %s50, %s51
      %p65 = scmp.eq.s32.totalorder %s20, 1
      %p66 = por %p64, %p65
      %p68 = scmp.ne.s32.totalorder %s51, %s67
      %p69 = scmp.eq.s32.totalorder %s20, 0
      %p70 = por %p68, %p69
      %s71 = sadd.s32 %s22, %s23
      %s72 = sadd.s32 %s36, %s32
      %s73 = ssub.s32 %s21, %s40
      %s74 = ssub.s32 %s71, %s72
      %s75 = sor.u32 %s73, %s74
      %p76 = scmp.eq.s32.totalorder %s75, 0
      %s78 = sadd.s32 %s77, 1
      %s79 = scalar_select %p76, %s77, %s78
      %p82 = pneg %p76
      %p83 = scmp.eq.s32.totalorder %s14, 1
      %p84 = por %p82, %p83
      %p85 = scmp.ne.s32.totalorder %s77, %s80
      %p86 = scmp.eq.s32.totalorder %s14, 0
      %p87 = por %p85, %p86
      %p88 = scmp.ne.s32.totalorder %s77, %s80
      %p89 = scmp.eq.s32.totalorder %s19, 1
      %p90 = por %p88, %p89
      %p91 = scmp.ne.s32.totalorder %s80, %s81
      %p92 = scmp.eq.s32.totalorder %s19, 0
      %p93 = por %p91, %p92
      %p94 = scmp.ne.s32.totalorder %s80, %s81
      %p95 = scmp.eq.s32.totalorder %s20, 1
      %p96 = por %p94, %p95
      %p98 = scmp.ne.s32.totalorder %s81, %s97
      %p99 = scmp.eq.s32.totalorder %s20, 0
      %p100 = por %p98, %p99
      %s101 = ssub.s32 %s21, %s40
      %s102 = ssub.s32 %s22, %s36
      %s103 = sor.u32 %s101, %s102
      %p104 = scmp.eq.s32.totalorder %s103, 0
      %s106 = sadd.s32 %s105, 1
      %s107 = scalar_select %p104, %s105, %s106
      %p110 = pneg %p104
      %p111 = scmp.eq.s32.totalorder %s14, 1
      %p112 = por %p110, %p111
      %p113 = scmp.ne.s32.totalorder %s105, %s108
      %p114 = scmp.eq.s32.totalorder %s14, 0
      %p115 = por %p113, %p114
      %p116 = scmp.ne.s32.totalorder %s105, %s108
      %p117 = scmp.eq.s32.totalorder %s19, 1
      %p118 = por %p116, %p117
      %p119 = scmp.ne.s32.totalorder %s108, %s109
      %p120 = scmp.eq.s32.totalorder %s19, 0
      %p121 = por %p119, %p120
      %p122 = scmp.ne.s32.totalorder %s108, %s109
      %p123 = scmp.eq.s32.totalorder %s20, 1
      %p124 = por %p122, %p123
      %p126 = scmp.ne.s32.totalorder %s109, %s125
      %p127 = scmp.eq.s32.totalorder %s20, 0
      %p128 = por %p126, %p127
      %p129 = scmp.le.s32.totalorder 1, %s14
      %p130 = scmp.lt.s32.totalorder %s14, 3
      %p131 = pnand %p129, %p130
      %p132 = pneg %p131
      // Predicated region
      $region9: #{tpu_custom_call.1} parent=5 // pred_check
        _
      $region10: #{tpu_custom_call.1} parent=5 // pred_check_branch
        %134 = sbr.rel (%p131) target = $region12
      $region11: #{tpu_custom_call.1} parent=5 // pred_region
        %s135 = ssub.s32 %s14, 1
      $region12: #{tpu_custom_call.1} parent=5 // pred_fallthru
        _
      %p136 = scmp.lt.s32.totalorder %s14, 2
      // Predicated region
      $region13: #{tpu_custom_call.1} parent=5 // pred_check
        %p137 = pneg %p136
      $region14: #{tpu_custom_call.1} parent=5 // pred_check_branch
        %139 = sbr.rel (%p137) target = $region16
      $region15: #{tpu_custom_call.1} parent=5 // pred_region
        // Predicated region
        $region17: #{tpu_custom_call.1} parent=15 // pred_check
          %p140 = pneg %p57
        $region18: #{tpu_custom_call.1} parent=15 // pred_check_branch
          %142 = sbr.rel (%p140) target = $region20
        $region19: #{tpu_custom_call.1} parent=15 // pred_region
          %s143 = sand.u32 %s47, 1
          %s144 = scalar_lea.sflag [#allocation3], %s143
          %s145 = sand.u32 %s47, 1
          %s146 = smul.addr %s145, 8
          %s147 = scalar_lea.vmem [#allocation2], %s146
          %s148 = sadd.s32 %s22, %s23
          %s149 = smul.u32 2, %s148
          %s151 = ssub.s32 128, 128
          %152 = vsyncadd %s144, %s151
          %s153 = smul.addr %s21, 2
          %s154 = sadd.s32 %s149, %s153
          %s155 = smul.addr %s154, 64
          %s156 = scalar_lea.hbm %s0, %s155
          %s158 = sshll.u32 %s147, 4
          %s159 = int_to_ptr.vmem [resolvable:$true] %s158
          %161 = dma.hbm_to_vmem [thread:$0]  %s156, 128, %s159, %s144
        $region20: #{tpu_custom_call.1} parent=15 // pred_fallthru
          _
        // Predicated region
        $region21: #{tpu_custom_call.1} parent=15 // pred_check
          %p162 = pneg %p87
        $region22: #{tpu_custom_call.1} parent=15 // pred_check_branch
          %164 = sbr.rel (%p162) target = $region24
        $region23: #{tpu_custom_call.1} parent=15 // pred_region
          %s165 = sand.u32 %s77, 1
          %s166 = scalar_lea.sflag [#allocation5], %s165
          %s167 = sand.u32 %s77, 1
          %s168 = smul.addr %s167, 2
          %s169 = scalar_lea.vmem [#allocation4], %s168
          %s170 = sadd.s32 %s22, %s23
          %s171 = smul.u32 2, %s170
          %s173 = ssub.s32 32, 32
          %174 = vsyncadd %s166, %s173
          %s175 = smul.addr %s21, 2
          %s176 = sadd.s32 %s171, %s175
          %s177 = smul.addr %s176, 16
          %s178 = scalar_lea.hbm %s1, %s177
          %s180 = sshll.u32 %s169, 4
          %s181 = int_to_ptr.vmem [resolvable:$true] %s180
          %183 = dma.hbm_to_vmem [thread:$0]  %s178, 32, %s181, %s166
        $region24: #{tpu_custom_call.1} parent=15 // pred_fallthru
          _
      $region16: #{tpu_custom_call.1} parent=5 // pred_fallthru
        _
      %p184 = scmp.le.s32.totalorder 1, %s14
      %p185 = scmp.lt.s32.totalorder %s14, 3
      %p186 = pnand %p184, %p185
      %p187 = pneg %p186
      // Predicated region
      $region25: #{tpu_custom_call.1} parent=5 // pred_check
        _
      $region26: #{tpu_custom_call.1} parent=5 // pred_check_branch
        %189 = sbr.rel (%p186) target = $region28
      $region27: #{tpu_custom_call.1} parent=5 // pred_region
        %s190 = ssub.s32 %s14, 1
        %s191 = sand.u32 %s50, 1
        %s192 = scalar_lea.sflag [#allocation3], %s191
        %s193 = sand.u32 %s50, 1
        %s194 = smul.addr %s193, 8
        %s195 = scalar_lea.vmem [#allocation2], %s194
        // Predicated region
        $region29: #{tpu_custom_call.1} parent=27 // pred_check
          %p196 = pneg %p63
        $region30: #{tpu_custom_call.1} parent=27 // pred_check_branch
          %198 = sbr.rel (%p196) target = $region32
        $region31: #{tpu_custom_call.1} parent=27 // pred_region
          %199 = dma.done %s192, 128
        $region32: #{tpu_custom_call.1} parent=27 // pred_fallthru
          _
        %s200 = sand.u32 %s80, 1
        %s201 = scalar_lea.sflag [#allocation5], %s200
        %s202 = sand.u32 %s80, 1
        %s203 = smul.addr %s202, 2
        %s204 = scalar_lea.vmem [#allocation4], %s203
        // Predicated region
        $region33: #{tpu_custom_call.1} parent=27 // pred_check
          %p205 = pneg %p93
        $region34: #{tpu_custom_call.1} parent=27 // pred_check_branch
          %207 = sbr.rel (%p205) target = $region36
        $region35: #{tpu_custom_call.1} parent=27 // pred_region
          %208 = dma.done %s201, 32
        $region36: #{tpu_custom_call.1} parent=27 // pred_fallthru
          _
        %s209 = sand.u32 %s50, 1
        %s210 = scalar_lea.sflag [#allocation3], %s209
        %s211 = sand.u32 %s50, 1
        %s212 = smul.addr %s211, 8
        %s213 = scalar_lea.vmem [#allocation2], %s212
        %p214 = pneg %p63
        %p215 = pneg %p60
        %s216 = sand.u32 %s80, 1
        %s217 = scalar_lea.sflag [#allocation5], %s216
        %s218 = sand.u32 %s80, 1
        %s219 = smul.addr %s218, 2
        %s220 = scalar_lea.vmem [#allocation4], %s219
        %p221 = pneg %p93
        %p222 = pneg %p90
        %p223 = pneg %p121
        %p224 = pneg %p118
        %p225 = scmp.lt.s32.totalorder %s24, 1
        %s226 = scalar_select %p225, %s24, 1
        %p227 = scmp.lt.s32.totalorder %s25, 0
        %s228 = scalar_select %p227, %s25, 0
        %s229 = sadd.s32 %s228, %s226
        %s230 = scalar_lea.vmem %s2, %s229
        %s231 = sadd.s32 %s25, %s26
        %s232 = smul.u32 2, %s231
        %s233 = sadd.s32 %s25, %s26
        %s234 = smul.u32 2, %s233
        %p235 = scmp.lt.s32.totalorder %s24, 1
        %s236 = scalar_select %p235, %s24, 1
        %p237 = scmp.lt.s32.totalorder %s25, 0
        %s238 = scalar_select %p237, %s25, 0
        %s239 = sadd.s32 %s238, %s236
        %s240 = scalar_lea.vmem %s2, %s239
        %p241 = scmp.eq.s32.totalorder %s26, 0
        // Predicated region
        $region37: #{tpu_custom_call.1} parent=27 // pred_check
          %p242 = pneg %p241
        $region38: #{tpu_custom_call.1} parent=27 // pred_check_branch
          %244 = sbr.rel (%p242) target = $region40
        $region39: #{tpu_custom_call.1} parent=27 // pred_region
          %vm245 = vcmask 0
          %246 = vst.msk [vmem:[%s240] sm:$0x1] %vm245, 0.0
        $region40: #{tpu_custom_call.1} parent=27 // pred_fallthru
          _
        %v247 = vld [vmem:[%s195] sm:$0xff]
        %v248 = vld [vmem:[%s204] sm:$0x3]
        %v250 = vcombine.high %v247, %v247
        %vm252 = vcmask 1043456
        %v253 = vsel %vm252, %v247, -inf
        %v254 = vrot.slane %v253, 4
        %v255 = vmax.f32 %v253, %v254
        %v256 = vrot.slane %v255, 2
        %v257 = vmax.f32 %v255, %v256
        %v258 = vrot.slane %v257, 1
        %v259 = vmax.f32 %v257, %v258
        %v260 = vsel %vm252, %v250, -inf
        %v261 = vrot.slane %v260, 4
        %v262 = vmax.f32 %v260, %v261
        %v263 = vrot.slane %v262, 2
        %v264 = vmax.f32 %v262, %v263
        %v265 = vrot.slane %v264, 1
        %v266 = vmax.f32 %v264, %v265
        %v269 = vcombine.low %v259, %v266
        %v271 = vsub.f32 %v247, %v269
        %v272 = vmul.f32 %v271, 1.442695
        %v273 = vpow.pop %v272
        %v275 = vcombine.high %v273, %v273
        %v277 = vsel %vm252, %v273, 0.0
        %v278 = vrot.slane %v277, 4
        %v279 = vadd.f32 %v277, %v278
        %v280 = vrot.slane %v279, 2
        %v281 = vadd.f32 %v279, %v280
        %v282 = vrot.slane %v281, 1
        %v283 = vadd.f32 %v281, %v282
        %v284 = vsel %vm252, %v275, 0.0
        %v285 = vrot.slane %v284, 4
        %v286 = vadd.f32 %v284, %v285
        %v287 = vrot.slane %v286, 2
        %v288 = vadd.f32 %v286, %v287
        %v289 = vrot.slane %v288, 1
        %v290 = vadd.f32 %v288, %v289
        %v291 = vlaneseq
        %v292 = vshrl.u32 %v291, 7
        %v293 = vlaneseq
        %v294 = vshrl.u32 %v293, 7
        %v295 = vsub.s32 0, %v294
        %v296 = vrot.slane %v248, %v295
        %v297 = vlaneseq
        %v298 = vshrl.u32 %v297, 7
        %v299 = vsub.s32 1, %v298
        %v300 = vrot.slane %v248, %v299
        %vm301 = vcmp.eq.s32.totalorder %v292, %v296
        %vm302 = vcmp.eq.s32.totalorder %v292, %v300
        %v304 = vcombine.high %v271, %v271
        %v306 = vsel %vm301, %v271, 0.0
        %v307 = vsel %vm302, %v304, 0.0
        %v308 = vsel %vm252, %v306, 0.0
        %v309 = vrot.slane %v308, 4
        %v310 = vadd.f32 %v308, %v309
        %v311 = vrot.slane %v310, 2
        %v312 = vadd.f32 %v310, %v311
        %v313 = vrot.slane %v312, 1
        %v314 = vadd.f32 %v312, %v313
        %v315 = vsel %vm252, %v307, 0.0
        %v316 = vrot.slane %v315, 4
        %v317 = vadd.f32 %v315, %v316
        %v318 = vrot.slane %v317, 2
        %v319 = vadd.f32 %v317, %v318
        %v320 = vrot.slane %v319, 1
        %v321 = vadd.f32 %v319, %v320
        %v322 = vsel %vm301, %v273, 0.0
        %v323 = vsel %vm302, %v275, 0.0
        %v324 = vsel %vm252, %v322, 0.0
        %v325 = vrot.slane %v324, 4
        %v326 = vadd.f32 %v324, %v325
        %v327 = vrot.slane %v326, 2
        %v328 = vadd.f32 %v326, %v327
        %v329 = vrot.slane %v328, 1
        %v330 = vadd.f32 %v328, %v329
        %v331 = vsel %vm252, %v323, 0.0
        %v332 = vrot.slane %v331, 4
        %v333 = vadd.f32 %v331, %v332
        %v334 = vrot.slane %v333, 2
        %v335 = vadd.f32 %v333, %v334
        %v336 = vrot.slane %v335, 1
        %v337 = vadd.f32 %v335, %v336
        %v338 = vlog2.pop %v283
        %v339 = vmul.f32 %v338, 0.6931472
        %v340 = vlog2.pop %v290
        %v341 = vmul.f32 %v340, 0.6931472
        %v342 = vsub.f32 %v314, %v339
        %v343 = vsub.f32 %v321, %v341
        %v344 = vrcp.pop %v283
        %v345 = vmul.f32 %v330, %v344
        %v346 = vrcp.pop %v290
        %v347 = vmul.f32 %v337, %v346
        %v348 = vsub.f32 1.0, %v345
        %v349 = vsub.f32 1.0, %v347
        %v350 = vmul.f32 %v348, %v348
        %v351 = vmul.f32 %v349, %v349
        %v352 = vsub.f32 0.0, %v350
        %v353 = vsub.f32 0.0, %v351
        %v354 = vmul.f32 %v352, %v342
        %v355 = vmul.f32 %v353, %v343
        %v356 = vld [vmem:[%s240] sm:$0x1]
        %v357 = vadd.f32 %v354, %v355
        %358 = vadd.xlane.f32.xlu0 %v357
        %v359 = vpop.xlane.xlu0 %358
        %v360 = vadd.f32 %v356, %v359
        %vm361 = vcmask 0
        %362 = vst.msk [vmem:[%s240] sm:$0x1] %vm361, %v360
        %p363 = scmp.lt.s32.totalorder %s24, 1
        %s364 = scalar_select %p363, %s24, 1
        %p365 = scmp.lt.s32.totalorder %s25, 0
        %s366 = scalar_select %p365, %s25, 0
        %s367 = sadd.s32 %s366, %s364
        %s368 = scalar_lea.vmem %s2, %s367
        // Predicated region
        $region41: #{tpu_custom_call.1} parent=27 // pred_check
          %p369 = pneg %p118
        $region42: #{tpu_custom_call.1} parent=27 // pred_check_branch
          %371 = sbr.rel (%p369) target = $region44
        $region43: #{tpu_custom_call.1} parent=27 // pred_region
          _
        $region44: #{tpu_custom_call.1} parent=27 // pred_fallthru
          _
      $region28: #{tpu_custom_call.1} parent=5 // pred_fallthru
        _
      %p372 = scmp.le.s32.totalorder 2, %s14
      // Predicated region
      $region45: #{tpu_custom_call.1} parent=5 // pred_check
        %p373 = pneg %p372
      $region46: #{tpu_custom_call.1} parent=5 // pred_check_branch
        %375 = sbr.rel (%p373) target = $region48
      $region47: #{tpu_custom_call.1} parent=5 // pred_region
        %s376 = ssub.s32 %s14, 2
        // Predicated region
        $region49: #{tpu_custom_call.1} parent=47 // pred_check
          %p377 = pneg %p124
        $region50: #{tpu_custom_call.1} parent=47 // pred_check_branch
          %379 = sbr.rel (%p377) target = $region52
        $region51: #{tpu_custom_call.1} parent=47 // pred_region
          %p380 = scmp.lt.s32.totalorder %s27, 1
          %s381 = scalar_select %p380, %s27, 1
          %p382 = scmp.lt.s32.totalorder %s28, 0
          %s383 = scalar_select %p382, %s28, 0
          %s384 = sadd.s32 %s383, %s381
          %s385 = scalar_lea.vmem %s2, %s384
        $region52: #{tpu_custom_call.1} parent=47 // pred_fallthru
          _
      $region48: #{tpu_custom_call.1} parent=5 // pred_fallthru
        _
    $region6: #{tpu_custom_call.1} parent=1 // loop_footer
      %s18 = sadd.s32 1, %s14
    $region7: #{tpu_custom_call.1} parent=1 // loop_footer_branch
      %13 = sbr.rel target = $region3
    $region8: #{tpu_custom_call.1} parent=1 // loop_exit
      _
    %386 = vsyncpa [#allocation3], 1
    %s387 = scalar_lea.sflag [#allocation3], 1
    %388 = vsyncpa %s387, 1
    %389 = vsyncpa [#allocation5], 1
    %s390 = scalar_lea.sflag [#allocation5], 1
    %391 = vsyncpa %s390, 1

</llo_original>
